<compile_context>
chip_gen: v5e
topology: v5e:2x2
jax: 0.10.0
libtpu: 0.0.40
codegen_flags: <defaults>
</compile_context>

<pallas_src>
import math

import jax
import jax.numpy as jnp
from jax.experimental import pallas as pl
from jax.experimental.pallas import tpu as pltpu
from jax.scipy.special import digamma

_MAX_TILE_ROWS = 1024  # N-tile size cap (rows); multiple of 16 for bf16 packing.


def _round_up(a, b):
    return (a + b - 1) // b * b


def _cd_imm_kernel(first_ref, ntiles_ref,          # scalar prefetch (SMEM)
                   y_ref, xcat_ref, w_ref, bias_ref,
                   counts_ref, elbo_ref):
    c = pl.program_id(0)   # class
    t = pl.program_id(1)   # N-tile index within this class's tile band

    # Zero the per-class accumulators once per class (outputs stay resident in
    # VMEM across the inner tile axis; flushed when the class index changes).
    @pl.when(t == 0)
    def _init():
        counts_ref[...] = jnp.zeros_like(counts_ref)
        elbo_ref[...] = jnp.zeros_like(elbo_ref)

    # Only the first ntiles[c] steps carry real, non-duplicated work; beyond
    # that the index_map clamps to the same block (no DMA) and we skip compute.
    @pl.when(t < ntiles_ref[c])
    def _step():
        xcat = xcat_ref[...]                 # [TN, 2D]  bf16: [x*x, x]
        w = w_ref[0]                         # [2D, Kp]  bf16: [-0.5*prec ; prec*tau]
        bias = bias_ref[0]                   # [1, Kp]   f32 (padded lanes = -1e30)

        # Fused quadratic form: one MXU push, f32 accumulation.
        logit = jnp.dot(xcat, w, preferred_element_type=jnp.float32)  # [TN, Kp]
        log_rho = bias + logit                                        # [TN, Kp]

        # Online-softmax style logsumexp; exp evaluated once.
        m = jnp.max(log_rho, axis=-1, keepdims=True)                  # [TN, 1]
        p = jnp.exp(log_rho - m)                                      # [TN, Kp]
        se = jnp.sum(p, axis=-1, keepdims=True)                       # [TN, 1]
        r = p * pl.reciprocal(se, approx=True)                        # [TN, Kp]
        lse = m + jnp.log(se)                                         # [TN, 1]

        # Class mask (x[y == c] of the torch forward); padded rows carry y=-1.
        mask = (y_ref[...] == c).astype(jnp.float32)                  # [TN, 1]

        counts_ref[...] += jnp.sum(mask * r, axis=0, keepdims=True)[None]
        elbo_ref[...] += jnp.sum(mask * lse, axis=(0, 1), keepdims=True)[None]


def cd_imm_forward(x, y, tau, prec, bias):
    """One CD_IMM.forward pass.

    x    [N, D]   f32 samples
    y    [N]      int labels in [0, C)
    tau  [C, K, D] expected component means
    prec [C, K, D] expected diagonal precisions E[lambda]
    bias [C, K]    data-independent per-component term
                   (E[log pi] + 0.5 E[log|Lambda|] - 0.5 D/c - 0.5 D log 2pi
                    - 0.5 sum_d E[lambda] tau^2)

    Returns (elbo_tot, current_task_counting_increment [C, K]).
    """
    N, D = x.shape
    C, K, _ = tau.shape

    TN = _round_up(min(_MAX_TILE_ROWS, _round_up(N, 8)), 16)
    Npad = _round_up(N, TN)
    T = Npad // TN
    Kp = _round_up(K, 128)

    # --- sort samples by class so each class owns a contiguous band of tiles.
    yi = y.astype(jnp.int32)
    order = jnp.argsort(yi)
    xs = x[order]
    ys = yi[order]

    # Xcat = [x*x, x]; square in f32, feed the MXU bf16 (f32 accumulation).
    xcat = jnp.concatenate([xs * xs, xs], axis=-1).astype(jnp.bfloat16)  # [N, 2D]
    xcat = jnp.pad(xcat, ((0, Npad - N), (0, 0)))
    ys = jnp.pad(ys, (0, Npad - N), constant_values=-1).reshape(Npad, 1)

    # Per-class tile band (scalar prefetch): first tile and #tiles per class.
    cnt = jnp.sum(yi[None, :] == jnp.arange(C, dtype=jnp.int32)[:, None],
                  axis=1).astype(jnp.int32)                    # [C]
    off = (jnp.cumsum(cnt) - cnt).astype(jnp.int32)            # exclusive cumsum
    first_tile = (off // TN).astype(jnp.int32)
    last_tile = jnp.where(cnt > 0, (off + cnt - 1) // TN, first_tile).astype(jnp.int32)
    n_tiles = (last_tile - first_tile + 1).astype(jnp.int32)   # >= 1 always

    # Fused weights: W[c, d, k] = -0.5*prec[c,k,d] ; W[c, D+d, k] = prec*tau.
    wq = -0.5 * jnp.swapaxes(prec, 1, 2)                       # [C, D, K]
    wl = jnp.swapaxes(prec * tau, 1, 2)                        # [C, D, K]
    w = jnp.concatenate([wq, wl], axis=1)                      # [C, 2D, K]
    w = jnp.pad(w, ((0, 0), (0, 0), (0, Kp - K))).astype(jnp.bfloat16)

    # Lane-pad bias with a huge negative so padded components contribute 0.
    bias_p = jnp.pad(bias.astype(jnp.float32), ((0, 0), (0, Kp - K)),
                     constant_values=-1e30).reshape(C, 1, Kp)

    def _row_map(c, t, first, ntl):
        # Clamp excess steps to the class's last tile -> same block, no re-DMA.
        return (first[c] + jnp.minimum(t, ntl[c] - 1), 0)

    counts, elbo = pl.pallas_call(
        _cd_imm_kernel,
        out_shape=(jax.ShapeDtypeStruct((C, 1, Kp), jnp.float32),
                   jax.ShapeDtypeStruct((C, 1, 1), jnp.float32)),
        grid_spec=pltpu.PrefetchScalarGridSpec(
            num_scalar_prefetch=2,
            grid=(C, T),
            in_specs=[
                pl.BlockSpec((TN, 1), _row_map),                              # y labels
                pl.BlockSpec((TN, 2 * D), _row_map),                          # [x*x, x]
                pl.BlockSpec((1, 2 * D, Kp), lambda c, t, f, n: (c, 0, 0)),   # W
                pl.BlockSpec((1, 1, Kp), lambda c, t, f, n: (c, 0, 0)),       # bias
            ],
            out_specs=[
                pl.BlockSpec((1, 1, Kp), lambda c, t, f, n: (c, 0, 0)),       # counts
                pl.BlockSpec((1, 1, 1), lambda c, t, f, n: (c, 0, 0)),        # elbo
            ],
        ),
        compiler_params=pltpu.CompilerParams(
            dimension_semantics=("parallel", "arbitrary"),
            vmem_limit_bytes=32 * 1024 * 1024),
    )(first_tile, n_tiles, ys, xcat, w, bias_p)

    elbo_tot = jnp.sum(elbo)                       # "elbo_tot += elbo" over classes
    current_task_counting = counts.reshape(C, Kp)[:, :K]
    return elbo_tot, current_task_counting


def cd_imm_reference(x, y, tau, prec, bias):
    """Pure-JAX reference using the same bf16 MXU inputs as the kernel."""
    C, K, D = tau.shape
    xcat = jnp.concatenate([x * x, x], axis=-1).astype(jnp.bfloat16)    # [N, 2D]
    wq = -0.5 * jnp.swapaxes(prec, 1, 2)
    wl = jnp.swapaxes(prec * tau, 1, 2)
    w = jnp.concatenate([wq, wl], axis=1).astype(jnp.bfloat16)          # [C, 2D, K]
    logit = jnp.einsum("nd,cdk->cnk", xcat, w,
                       preferred_element_type=jnp.float32)              # [C, N, K]
    log_rho = bias[:, None, :].astype(jnp.float32) + logit
    m = jnp.max(log_rho, axis=-1, keepdims=True)
    p = jnp.exp(log_rho - m)
    se = jnp.sum(p, axis=-1, keepdims=True)
    r = p / se
    lse = (m + jnp.log(se))[..., 0]                                     # [C, N]
    mask = (y[None, :].astype(jnp.int32) ==
            jnp.arange(C, dtype=jnp.int32)[:, None]).astype(jnp.float32)
    counts = jnp.einsum("cn,cnk->ck", mask, r)
    elbo = jnp.sum(mask * lse)
    return elbo, counts


def init_dpmm_expected_params(key, num_classes, K, D,
                              alphaDP=1.0, variance_init_value=1.0):
    """Variational-parameter init mirroring CLGaussianDPMM.init_var_params,
    converted to the expected statistics the E-step kernel consumes."""
    u = jnp.ones((num_classes, K), jnp.float32)
    v = alphaDP * jnp.ones((num_classes, K), jnp.float32)
    c_ = jnp.ones((num_classes, K), jnp.float32)
    n = (D + 2.0) * jnp.ones((num_classes, K), jnp.float32)
    tau = 0.5 * jax.random.normal(key, (num_classes, K, D), jnp.float32)
    B = variance_init_value * jnp.ones((num_classes, K, D), jnp.float32)

    # Diagonal Normal-Gamma posterior expectations.
    e_prec = n[..., None] / B
    e_logdet = jnp.sum(digamma(n[..., None] / 2.0) - jnp.log(B / 2.0), axis=-1)

    # Stick-breaking expected log mixture weights.
    e_log_v = digamma(u) - digamma(u + v)
    e_log_1mv = digamma(v) - digamma(u + v)
    excl_cumsum = jnp.cumsum(e_log_1mv, axis=-1) - e_log_1mv
    e_log_pi = e_log_v + excl_cumsum

    bias = (e_log_pi
            + 0.5 * e_logdet
            - 0.5 * D / c_
            - 0.5 * D * math.log(2.0 * math.pi)
            - 0.5 * jnp.sum(e_prec * tau * tau, axis=-1))
    return tau, e_prec, bias


if __name__ == "__main__":
    num_classes, K, D, N = 3, 8, 32, 16

    key = jax.random.PRNGKey(0)
    kx, ky, kp = jax.random.split(key, 3)
    x = jax.random.normal(kx, (N, D), dtype=jnp.float32)
    y = jax.random.randint(ky, (N,), 0, num_classes)
    tau, prec, bias = init_dpmm_expected_params(
        kp, num_classes, K, D, alphaDP=1.0, variance_init_value=1.0)

    elbo_tot, counting = jax.jit(cd_imm_forward)(x, y, tau, prec, bias)
    jax.block_until_ready((elbo_tot, counting))

    ref_elbo, ref_counts = cd_imm_reference(x, y, tau, prec, bias)

    assert counting.shape == (num_classes, K)
    assert bool(jnp.isfinite(elbo_tot))
    assert bool(jnp.all(jnp.isfinite(counting)))
    assert bool(jnp.allclose(counting, ref_counts, rtol=5e-2, atol=5e-2)), (
        counting, ref_counts)
    assert bool(jnp.allclose(elbo_tot, ref_elbo, rtol=5e-2, atol=5e-1)), (
        elbo_tot, ref_elbo)
    print("KERNEL_OK")
</pallas_src>

<mosaic_0001>
module attributes {stable_mosaic.version = 11 : i64} {
  func.func @_cd_imm_kernel(%arg0: i32, %arg1: i32, %arg2: memref<3xi32, #tpu.memory_space<smem>>, %arg3: memref<3xi32, #tpu.memory_space<smem>>, %arg4: memref<16x1xi32, #tpu.memory_space<vmem>>, %arg5: memref<16x64xbf16, #tpu.memory_space<vmem>>, %arg6: memref<1x64x128xbf16, #tpu.memory_space<vmem>>, %arg7: memref<1x1x128xf32, #tpu.memory_space<vmem>>, %arg8: memref<1x1x128xf32, #tpu.memory_space<vmem>>, %arg9: memref<1x1x1xf32, #tpu.memory_space<vmem>>) attributes {dimension_semantics = [#tpu.dimension_semantics<parallel>, #tpu.dimension_semantics<arbitrary>], iteration_bounds = array<i64: 3, 1>, scalar_prefetch = 2 : i64, scratch_operands = 0 : i64, tpu.core_type = #tpu.core_type<tc>, window_params = [{transform_indices = @transform_0, window_bounds = array<i64: 16, 1>}, {transform_indices = @transform_1, window_bounds = array<i64: 16, 64>}, {transform_indices = @transform_2, window_bounds = array<i64: 1, 64, 128>}, {transform_indices = @transform_3, window_bounds = array<i64: 1, 1, 128>}, {transform_indices = @transform_4, window_bounds = array<i64: 1, 1, 128>}, {transform_indices = @transform_5, window_bounds = array<i64: 1, 1, 1>}]} {
    %c0_i32 = arith.constant 0 : i32
    %0 = arith.cmpi eq, %arg1, %c0_i32 : i32
    %1 = arith.extui %0 : i1 to i32
    %c0_i32_0 = arith.constant 0 : i32
    %2 = arith.cmpi ne, %1, %c0_i32_0 : i32
    scf.if %2 {
      %cst = arith.constant 0.000000e+00 : f32
      %8 = vector.broadcast %cst : f32 to vector<1x1x128xf32>
      %c0 = arith.constant 0 : index
      %c0_2 = arith.constant 0 : index
      %c0_3 = arith.constant 0 : index
      %9 = vector.load %arg8[%c0, %c0_2, %c0_3] : memref<1x1x128xf32, #tpu.memory_space<vmem>>, vector<1x1x128xf32>
      tpu.vector_store %arg8[%c0, %c0_2, %c0_3], %8 {strides = array<i32>} : memref<1x1x128xf32, #tpu.memory_space<vmem>>, vector<1x1x128xf32>,
      %cst_4 = arith.constant 0.000000e+00 : f32
      %10 = vector.broadcast %cst_4 : f32 to vector<1x1x1xf32>
      %c0_5 = arith.constant 0 : index
      %c0_6 = arith.constant 0 : index
      %c0_7 = arith.constant 0 : index
      %11 = vector.load %arg9[%c0_5, %c0_6, %c0_7] : memref<1x1x1xf32, #tpu.memory_space<vmem>>, vector<1x1x1xf32>
      tpu.vector_store %arg9[%c0_5, %c0_6, %c0_7], %10 {strides = array<i32>} : memref<1x1x1xf32, #tpu.memory_space<vmem>>, vector<1x1x1xf32>,
    } else {
    }
    %3 = arith.index_cast %arg0 : i32 to index
    %4 = memref.load %arg3[%3] : memref<3xi32, #tpu.memory_space<smem>>
    %5 = arith.cmpi slt, %arg1, %4 : i32
    %6 = arith.extui %5 : i1 to i32
    %c0_i32_1 = arith.constant 0 : i32
    %7 = arith.cmpi ne, %6, %c0_i32_1 : i32
    scf.if %7 {
      %c0 = arith.constant 0 : index
      %c0_2 = arith.constant 0 : index
      %8 = vector.load %arg5[%c0, %c0_2] : memref<16x64xbf16, #tpu.memory_space<vmem>>, vector<16x64xbf16>
      %c0_3 = arith.constant 0 : index
      %c0_4 = arith.constant 0 : index
      %c0_5 = arith.constant 0 : index
      %9 = vector.load %arg6[%c0_3, %c0_4, %c0_5] : memref<1x64x128xbf16, #tpu.memory_space<vmem>>, vector<1x64x128xbf16>
      %10 = vector.shape_cast %9 : vector<1x64x128xbf16> to vector<64x128xbf16>
      %c0_6 = arith.constant 0 : index
      %c0_7 = arith.constant 0 : index
      %c0_8 = arith.constant 0 : index
      %11 = vector.load %arg7[%c0_6, %c0_7, %c0_8] : memref<1x1x128xf32, #tpu.memory_space<vmem>>, vector<1x1x128xf32>
      %12 = vector.shape_cast %11 : vector<1x1x128xf32> to vector<1x128xf32>
      %cst = arith.constant dense<0.000000e+00> : vector<16x128xf32>
      %13 = tpu.matmul %8, %10, %cst {dimension_numbers = #tpu.dot_dimension_numbers<[1], [0], [0], [1], [0, 0, 1, 1], [], []>} : vector<16x64xbf16>, vector<64x128xbf16>, vector<16x128xf32> -> vector<16x128xf32>
      %14 = vector.broadcast %12 : vector<1x128xf32> to vector<16x128xf32>
      %15 = arith.addf %14, %13 : vector<16x128xf32>
      %cst_9 = arith.constant dense<0xFF800000> : vector<16xf32>
      %16 = vector.multi_reduction <maximumf>, %15, %cst_9 [1] : vector<16x128xf32> to vector<16xf32>
      %17 = vector.shape_cast %16 : vector<16xf32> to vector<16x1xf32>
      %18 = vector.broadcast %17 : vector<16x1xf32> to vector<16x128xf32>
      %19 = arith.subf %15, %18 : vector<16x128xf32>
      %20 = math.exp %19 : vector<16x128xf32>
      %cst_10 = arith.constant dense<0.000000e+00> : vector<16xf32>
      %21 = vector.multi_reduction <add>, %20, %cst_10 [1] : vector<16x128xf32> to vector<16xf32>
      %22 = vector.shape_cast %21 : vector<16xf32> to vector<16x1xf32>
      %23 = tpu.reciprocal %22 {approx = true} : vector<16x1xf32> -> vector<16x1xf32>
      %24 = vector.broadcast %23 : vector<16x1xf32> to vector<16x128xf32>
      %25 = arith.mulf %20, %24 : vector<16x128xf32>
      %26 = math.log %22 : vector<16x1xf32>
      %27 = arith.addf %17, %26 : vector<16x1xf32>
      %c0_11 = arith.constant 0 : index
      %c0_12 = arith.constant 0 : index
      %28 = vector.load %arg4[%c0_11, %c0_12] : memref<16x1xi32, #tpu.memory_space<vmem>>, vector<16x1xi32>
      %29 = vector.broadcast %arg0 : i32 to vector<16x1xi32>
      %30 = arith.cmpi eq, %28, %29 : vector<16x1xi32>
      %31 = arith.extui %30 : vector<16x1xi1> to vector<16x1xi32>
      %32 = arith.sitofp %31 : vector<16x1xi32> to vector<16x1xf32>
      %c0_13 = arith.constant 0 : index
      %c0_14 = arith.constant 0 : index
      %c0_15 = arith.constant 0 : index
      %33 = vector.load %arg8[%c0_13, %c0_14, %c0_15] : memref<1x1x128xf32, #tpu.memory_space<vmem>>, vector<1x1x128xf32>
      %34 = vector.broadcast %32 : vector<16x1xf32> to vector<16x128xf32>
      %35 = arith.mulf %34, %25 : vector<16x128xf32>
      %cst_16 = arith.constant dense<0.000000e+00> : vector<128xf32>
      %36 = vector.multi_reduction <add>, %35, %cst_16 [0] : vector<16x128xf32> to vector<128xf32>
      %37 = vector.shape_cast %36 : vector<128xf32> to vector<1x128xf32>
      %38 = vector.shape_cast %37 : vector<1x128xf32> to vector<1x1x128xf32>
      %39 = arith.addf %33, %38 : vector<1x1x128xf32>
      %c0_17 = arith.constant 0 : index
      %c0_18 = arith.constant 0 : index
      %c0_19 = arith.constant 0 : index
      %40 = vector.load %arg8[%c0_17, %c0_18, %c0_19] : memref<1x1x128xf32, #tpu.memory_space<vmem>>, vector<1x1x128xf32>
      tpu.vector_store %arg8[%c0_17, %c0_18, %c0_19], %39 {strides = array<i32>} : memref<1x1x128xf32, #tpu.memory_space<vmem>>, vector<1x1x128xf32>,
      %c0_20 = arith.constant 0 : index
      %c0_21 = arith.constant 0 : index
      %c0_22 = arith.constant 0 : index
      %41 = vector.load %arg9[%c0_20, %c0_21, %c0_22] : memref<1x1x1xf32, #tpu.memory_space<vmem>>, vector<1x1x1xf32>
      %42 = arith.mulf %32, %27 : vector<16x1xf32>
      %43 = vector.shape_cast %42 : vector<16x1xf32> to vector<1x16x1xf32>
      %cst_23 = arith.constant dense<0.000000e+00> : vector<1xf32>
      %44 = vector.multi_reduction <add>, %43, %cst_23 [1, 2] : vector<1x16x1xf32> to vector<1xf32>
      %45 = vector.shape_cast %44 : vector<1xf32> to vector<1x1x1xf32>
      %46 = vector.extract %45[0, 0, 0] : f32 from vector<1x1x1xf32>
      %47 = vector.broadcast %46 : f32 to vector<1x1xf32>
      %48 = vector.shape_cast %47 : vector<1x1xf32> to vector<1x1x1xf32>
      %49 = arith.addf %41, %48 : vector<1x1x1xf32>
      %c0_24 = arith.constant 0 : index
      %c0_25 = arith.constant 0 : index
      %c0_26 = arith.constant 0 : index
      %50 = vector.load %arg9[%c0_24, %c0_25, %c0_26] : memref<1x1x1xf32, #tpu.memory_space<vmem>>, vector<1x1x1xf32>
      tpu.vector_store %arg9[%c0_24, %c0_25, %c0_26], %49 {strides = array<i32>} : memref<1x1x1xf32, #tpu.memory_space<vmem>>, vector<1x1x1xf32>,
    } else {
    }
    return
  }
  func.func @transform_0(%arg0: i32, %arg1: i32, %arg2: memref<3xi32, #tpu.memory_space<smem>>, %arg3: memref<3xi32, #tpu.memory_space<smem>>) -> (i32, i32) {
    %0 = arith.index_cast %arg0 : i32 to index
    %1 = memref.load %arg2[%0] : memref<3xi32, #tpu.memory_space<smem>>
    %2 = arith.index_cast %arg0 : i32 to index
    %3 = memref.load %arg3[%2] : memref<3xi32, #tpu.memory_space<smem>>
    %c1_i32 = arith.constant 1 : i32
    %4 = arith.subi %3, %c1_i32 : i32
    %5 = arith.minsi %arg1, %4 : i32
    %6 = arith.addi %1, %5 : i32
    %c0_i32 = arith.constant 0 : i32
    %c0_i32_0 = arith.constant 0 : i32
    return %6, %c0_i32 : i32, i32
  }
  func.func @transform_1(%arg0: i32, %arg1: i32, %arg2: memref<3xi32, #tpu.memory_space<smem>>, %arg3: memref<3xi32, #tpu.memory_space<smem>>) -> (i32, i32) {
    %0 = arith.index_cast %arg0 : i32 to index
    %1 = memref.load %arg2[%0] : memref<3xi32, #tpu.memory_space<smem>>
    %2 = arith.index_cast %arg0 : i32 to index
    %3 = memref.load %arg3[%2] : memref<3xi32, #tpu.memory_space<smem>>
    %c1_i32 = arith.constant 1 : i32
    %4 = arith.subi %3, %c1_i32 : i32
    %5 = arith.minsi %arg1, %4 : i32
    %6 = arith.addi %1, %5 : i32
    %c0_i32 = arith.constant 0 : i32
    %c0_i32_0 = arith.constant 0 : i32
    return %6, %c0_i32 : i32, i32
  }
  func.func @transform_2(%arg0: i32, %arg1: i32, %arg2: memref<3xi32, #tpu.memory_space<smem>>, %arg3: memref<3xi32, #tpu.memory_space<smem>>) -> (i32, i32, i32) {
    %c0_i32 = arith.constant 0 : i32
    %c0_i32_0 = arith.constant 0 : i32
    %c0_i32_1 = arith.constant 0 : i32
    return %arg0, %c0_i32, %c0_i32_0 : i32, i32, i32
  }
  func.func @transform_3(%arg0: i32, %arg1: i32, %arg2: memref<3xi32, #tpu.memory_space<smem>>, %arg3: memref<3xi32, #tpu.memory_space<smem>>) -> (i32, i32, i32) {
    %c0_i32 = arith.constant 0 : i32
    %c0_i32_0 = arith.constant 0 : i32
    %c0_i32_1 = arith.constant 0 : i32
    return %arg0, %c0_i32, %c0_i32_0 : i32, i32, i32
  }
  func.func @transform_4(%arg0: i32, %arg1: i32, %arg2: memref<3xi32, #tpu.memory_space<smem>>, %arg3: memref<3xi32, #tpu.memory_space<smem>>) -> (i32, i32, i32) {
    %c0_i32 = arith.constant 0 : i32
    %c0_i32_0 = arith.constant 0 : i32
    %c0_i32_1 = arith.constant 0 : i32
    return %arg0, %c0_i32, %c0_i32_0 : i32, i32, i32
  }
  func.func @transform_5(%arg0: i32, %arg1: i32, %arg2: memref<3xi32, #tpu.memory_space<smem>>, %arg3: memref<3xi32, #tpu.memory_space<smem>>) -> (i32, i32, i32) {
    %c0_i32 = arith.constant 0 : i32
    %c0_i32_0 = arith.constant 0 : i32
    %c0_i32_1 = arith.constant 0 : i32
    return %arg0, %c0_i32, %c0_i32_0 : i32, i32, i32
  }
}

</mosaic_0001>

<llo_original>
// kernel: cd_imm_forward.1
$region0: #{cd_imm_forward.1}
  #allocation0 [shape = 'u32[]', space=smem, size = 0x4, offset = 0x4, fixed_abs, tag = 'smem constant byte address 0x4 - core index']
  #allocation1 [shape = 'u32[72,128]{1,0:T(1,128)}', space=vmem, size = 0x9000, scoped, tag = 'internal scratch']
  #allocation2 [shape = 's32[1]{0}', space=sflag, size = 0x4, scoped, tag = 'scoped memory for cd_imm_forward.1']
  #allocation3 [shape = 'u8[512]{0}', space=smem, size = 0x200, scoped, tag = 'prefetched SMEM operand 0']
  #allocation4 [shape = 'u8[512]{0}', space=smem, size = 0x200, scoped, tag = 'prefetched SMEM operand 1']
  %s0 = inlined_call_operand.vmem [shape: s32[3], index: 0, kind: input, shape index: {}]
  %s1 = inlined_call_operand.vmem [shape: s32[3], index: 1, kind: input, shape index: {}]
  %s2 = inlined_call_operand.vmem [shape: s32[16,1], index: 2, kind: input, shape index: {}]
  %s3 = inlined_call_operand.vmem [shape: bf16[16,64], index: 3, kind: input, shape index: {}]
  %s4 = inlined_call_operand.vmem [shape: bf16[3,64,128], index: 4, kind: input, shape index: {}]
  %s5 = inlined_call_operand.vmem [shape: f32[3,1,128], index: 5, kind: input, shape index: {}]
  %s6 = inlined_call_operand.vmem [shape: f32[3,1,128], index: 6, kind: output, shape index: {0}]
  %s7 = inlined_call_operand.vmem [shape: f32[3,1,1], index: 7, kind: output, shape index: {1}]
  %8 = xla_tuple %s6, %s7
  %s9 = sld [smem:[#allocation0]]
  $region65: #{cd_imm_forward.1} parent=0
    _
  %s11 = ssub.s32 1, %s9
  %s12 = scalar_select 0, %s11, %s9
  %s14 = sshll.u32 %s0, 4
  %s15 = int_to_ptr.vmem [resolvable:$true] %s14
  %17 = dma.vmem_to_smem %s15, 16, [#allocation3], [#allocation2]
  %s19 = sshll.u32 %s1, 4
  %s20 = int_to_ptr.vmem [resolvable:$true] %s19
  %22 = dma.vmem_to_smem %s20, 16, [#allocation4], [#allocation2]
  %24 = dma.done [#allocation2], 32
  %25 = sfence
  loop: start=0, step=1, limit=5
  $region2: #{cd_imm_forward.1} parent=0 // loop_pre_header
    _
  $region3: #{cd_imm_forward.1} parent=0 // loop_header
    %s27 = sphi 0, %s31
    %p28 = scmp.ge.s32.totalorder %s27, 5
    %s34 = sphi 0, %s46
    %s35 = sphi 0, %s42
    %s36 = sphi 0, %s34
    %s37 = sphi 0, %s35
    %s38 = sphi 0, %s36
    %s39 = sphi 0, %s37
    %s61 = sphi 0, %s63
    %s64 = sphi 0, %s61
    %s65 = sphi 0, %s64
    %s81 = sphi 0, %s65
    %s99 = sphi 0, %s101
    %s102 = sphi 0, %s99
    %s103 = sphi 0, %s102
    %s119 = sphi 0, %s103
    %s125 = sphi 0, %s127
    %s128 = sphi 0, %s125
    %s129 = sphi 0, %s128
    %s145 = sphi 0, %s129
    %s151 = sphi 0, %s153
    %s154 = sphi 0, %s151
    %s155 = sphi 0, %s154
    %s171 = sphi 0, %s155
    %s177 = sphi 0, %s179
    %s180 = sphi 0, %s177
    %s181 = sphi 0, %s180
    %s197 = sphi 0, %s181
    %s203 = sphi 0, %s205
    %s206 = sphi 0, %s203
    %s207 = sphi 0, %s206
    %s223 = sphi 0, %s207
  $region4: #{cd_imm_forward.1} parent=0 // loop_header_branch
    %30 = sbr.rel (%p28) target = $region8
  $region5: #{cd_imm_forward.1} parent=0 // loop_body
    %s32 = ssub.s32 %s27, 1
    %s33 = ssub.s32 %s27, 2
    %s40 = sadd.s32 1, %s35
    %p41 = scmp.ge.s32.totalorder %s40, 1
    %s42 = scalar_select %p41, 0, %s40
    %s43 = sadd.s32 1, %s34
    %s44 = scalar_select %p41, %s43, %s34
    %p45 = scmp.ge.s32.totalorder %s44, 3
    %s46 = scalar_select %p45, 0, %s44
    %s47 = sld [smem:[#allocation3 + %s34]]
    %s48 = sld [smem:[#allocation4 + %s34]]
    %s49 = ssub.s32 %s48, 1
    %p50 = scmp.lt.s32.totalorder %s35, %s49
    %s51 = scalar_select %p50, %s35, %s49
    %s52 = sadd.s32 %s47, %s51
    %s53 = sld [smem:[#allocation3 + %s46]]
    %s54 = sld [smem:[#allocation4 + %s46]]
    %s55 = ssub.s32 %s54, 1
    %p56 = scmp.lt.s32.totalorder %s42, %s55
    %s57 = scalar_select %p56, %s42, %s55
    %s58 = sadd.s32 %s53, %s57
    %s59 = ssub.s32 %s52, %s58
    %p60 = scmp.eq.s32.totalorder %s59, 0
    %s62 = sadd.s32 %s61, 1
    %s63 = scalar_select %p60, %s61, %s62
    %p66 = pneg %p60
    %p67 = scmp.eq.s32.totalorder %s27, 2
    %p68 = por %p66, %p67
    %p69 = scmp.ne.s32.totalorder %s61, %s64
    %p70 = scmp.eq.s32.totalorder %s27, 0
    %p71 = por %p69, %p70
    %p72 = scmp.ne.s32.totalorder %s61, %s64
    %p73 = scmp.eq.s32.totalorder %s32, 2
    %p74 = por %p72, %p73
    %p75 = scmp.ne.s32.totalorder %s64, %s65
    %p76 = scmp.eq.s32.totalorder %s32, 0
    %p77 = por %p75, %p76
    %p78 = scmp.ne.s32.totalorder %s64, %s65
    %p79 = scmp.eq.s32.totalorder %s33, 2
    %p80 = por %p78, %p79
    %p82 = scmp.ne.s32.totalorder %s65, %s81
    %p83 = scmp.eq.s32.totalorder %s33, 0
    %p84 = por %p82, %p83
    %s85 = sld [smem:[#allocation3 + %s34]]
    %s86 = sld [smem:[#allocation4 + %s34]]
    %s87 = ssub.s32 %s86, 1
    %p88 = scmp.lt.s32.totalorder %s35, %s87
    %s89 = scalar_select %p88, %s35, %s87
    %s90 = sadd.s32 %s85, %s89
    %s91 = sld [smem:[#allocation3 + %s46]]
    %s92 = sld [smem:[#allocation4 + %s46]]
    %s93 = ssub.s32 %s92, 1
    %p94 = scmp.lt.s32.totalorder %s42, %s93
    %s95 = scalar_select %p94, %s42, %s93
    %s96 = sadd.s32 %s91, %s95
    %s97 = ssub.s32 %s90, %s96
    %p98 = scmp.eq.s32.totalorder %s97, 0
    %s100 = sadd.s32 %s99, 1
    %s101 = scalar_select %p98, %s99, %s100
    %p104 = pneg %p98
    %p105 = scmp.eq.s32.totalorder %s27, 2
    %p106 = por %p104, %p105
    %p107 = scmp.ne.s32.totalorder %s99, %s102
    %p108 = scmp.eq.s32.totalorder %s27, 0
    %p109 = por %p107, %p108
    %p110 = scmp.ne.s32.totalorder %s99, %s102
    %p111 = scmp.eq.s32.totalorder %s32, 2
    %p112 = por %p110, %p111
    %p113 = scmp.ne.s32.totalorder %s102, %s103
    %p114 = scmp.eq.s32.totalorder %s32, 0
    %p115 = por %p113, %p114
    %p116 = scmp.ne.s32.totalorder %s102, %s103
    %p117 = scmp.eq.s32.totalorder %s33, 2
    %p118 = por %p116, %p117
    %p120 = scmp.ne.s32.totalorder %s103, %s119
    %p121 = scmp.eq.s32.totalorder %s33, 0
    %p122 = por %p120, %p121
    %s123 = ssub.s32 %s34, %s46
    %p124 = scmp.eq.s32.totalorder %s123, 0
    %s126 = sadd.s32 %s125, 1
    %s127 = scalar_select %p124, %s125, %s126
    %p130 = pneg %p124
    %p131 = scmp.eq.s32.totalorder %s27, 2
    %p132 = por %p130, %p131
    %p133 = scmp.ne.s32.totalorder %s125, %s128
    %p134 = scmp.eq.s32.totalorder %s27, 0
    %p135 = por %p133, %p134
    %p136 = scmp.ne.s32.totalorder %s125, %s128
    %p137 = scmp.eq.s32.totalorder %s32, 2
    %p138 = por %p136, %p137
    %p139 = scmp.ne.s32.totalorder %s128, %s129
    %p140 = scmp.eq.s32.totalorder %s32, 0
    %p141 = por %p139, %p140
    %p142 = scmp.ne.s32.totalorder %s128, %s129
    %p143 = scmp.eq.s32.totalorder %s33, 2
    %p144 = por %p142, %p143
    %p146 = scmp.ne.s32.totalorder %s129, %s145
    %p147 = scmp.eq.s32.totalorder %s33, 0
    %p148 = por %p146, %p147
    %s149 = ssub.s32 %s34, %s46
    %p150 = scmp.eq.s32.totalorder %s149, 0
    %s152 = sadd.s32 %s151, 1
    %s153 = scalar_select %p150, %s151, %s152
    %p156 = pneg %p150
    %p157 = scmp.eq.s32.totalorder %s27, 2
    %p158 = por %p156, %p157
    %p159 = scmp.ne.s32.totalorder %s151, %s154
    %p160 = scmp.eq.s32.totalorder %s27, 0
    %p161 = por %p159, %p160
    %p162 = scmp.ne.s32.totalorder %s151, %s154
    %p163 = scmp.eq.s32.totalorder %s32, 2
    %p164 = por %p162, %p163
    %p165 = scmp.ne.s32.totalorder %s154, %s155
    %p166 = scmp.eq.s32.totalorder %s32, 0
    %p167 = por %p165, %p166
    %p168 = scmp.ne.s32.totalorder %s154, %s155
    %p169 = scmp.eq.s32.totalorder %s33, 2
    %p170 = por %p168, %p169
    %p172 = scmp.ne.s32.totalorder %s155, %s171
    %p173 = scmp.eq.s32.totalorder %s33, 0
    %p174 = por %p172, %p173
    %s175 = ssub.s32 %s34, %s46
    %p176 = scmp.eq.s32.totalorder %s175, 0
    %s178 = sadd.s32 %s177, 1
    %s179 = scalar_select %p176, %s177, %s178
    %p182 = pneg %p176
    %p183 = scmp.eq.s32.totalorder %s27, 2
    %p184 = por %p182, %p183
    %p185 = scmp.ne.s32.totalorder %s177, %s180
    %p186 = scmp.eq.s32.totalorder %s27, 0
    %p187 = por %p185, %p186
    %p188 = scmp.ne.s32.totalorder %s177, %s180
    %p189 = scmp.eq.s32.totalorder %s32, 2
    %p190 = por %p188, %p189
    %p191 = scmp.ne.s32.totalorder %s180, %s181
    %p192 = scmp.eq.s32.totalorder %s32, 0
    %p193 = por %p191, %p192
    %p194 = scmp.ne.s32.totalorder %s180, %s181
    %p195 = scmp.eq.s32.totalorder %s33, 2
    %p196 = por %p194, %p195
    %p198 = scmp.ne.s32.totalorder %s181, %s197
    %p199 = scmp.eq.s32.totalorder %s33, 0
    %p200 = por %p198, %p199
    %s201 = ssub.s32 %s34, %s46
    %p202 = scmp.eq.s32.totalorder %s201, 0
    %s204 = sadd.s32 %s203, 1
    %s205 = scalar_select %p202, %s203, %s204
    %p208 = pneg %p202
    %p209 = scmp.eq.s32.totalorder %s27, 2
    %p210 = por %p208, %p209
    %p211 = scmp.ne.s32.totalorder %s203, %s206
    %p212 = scmp.eq.s32.totalorder %s27, 0
    %p213 = por %p211, %p212
    %p214 = scmp.ne.s32.totalorder %s203, %s206
    %p215 = scmp.eq.s32.totalorder %s32, 2
    %p216 = por %p214, %p215
    %p217 = scmp.ne.s32.totalorder %s206, %s207
    %p218 = scmp.eq.s32.totalorder %s32, 0
    %p219 = por %p217, %p218
    %p220 = scmp.ne.s32.totalorder %s206, %s207
    %p221 = scmp.eq.s32.totalorder %s33, 2
    %p222 = por %p220, %p221
    %p224 = scmp.ne.s32.totalorder %s207, %s223
    %p225 = scmp.eq.s32.totalorder %s33, 0
    %p226 = por %p224, %p225
    %p227 = scmp.le.s32.totalorder 1, %s27
    %p228 = scmp.lt.s32.totalorder %s27, 4
    %p229 = pnand %p227, %p228
    %p230 = pneg %p229
    // Predicated region
    $region9: #{cd_imm_forward.1} parent=5 // pred_check
      _
    $region10: #{cd_imm_forward.1} parent=5 // pred_check_branch
      %232 = sbr.rel (%p229) target = $region12
    $region11: #{cd_imm_forward.1} parent=5 // pred_region
      %s233 = ssub.s32 %s27, 1
    $region12: #{cd_imm_forward.1} parent=5 // pred_fallthru
      _
    %p234 = scmp.lt.s32.totalorder %s27, 3
    // Predicated region
    $region13: #{cd_imm_forward.1} parent=5 // pred_check
      %p235 = pneg %p234
    $region14: #{cd_imm_forward.1} parent=5 // pred_check_branch
      %237 = sbr.rel (%p235) target = $region16
    $region15: #{cd_imm_forward.1} parent=5 // pred_region
      // Predicated region
      $region17: #{cd_imm_forward.1} parent=15 // pred_check
        %p238 = pneg %p71
      $region18: #{cd_imm_forward.1} parent=15 // pred_check_branch
        %240 = sbr.rel (%p238) target = $region20
      $region19: #{cd_imm_forward.1} parent=15 // pred_region
        %s241 = sld [smem:[#allocation3 + %s34]]
        %s242 = sld [smem:[#allocation4 + %s34]]
        %s243 = ssub.s32 %s242, 1
        %p244 = scmp.lt.s32.totalorder %s35, %s243
        %s245 = scalar_select %p244, %s35, %s243
        %s246 = sadd.s32 %s241, %s245
        %s247 = smul.u32 2, %s246
        %p248 = scmp.lt.s32.totalorder %s247, 1
        %s249 = scalar_select %p248, %s247, 1
        %s250 = smul.addr %s249, 8
        %s251 = scalar_lea.vmem %s2, %s250
        %s252 = sld [smem:[#allocation3 + %s34]]
        %s253 = sld [smem:[#allocation4 + %s34]]
        %s254 = ssub.s32 %s253, 1
        %p255 = scmp.lt.s32.totalorder %s35, %s254
        %s256 = scalar_select %p255, %s35, %s254
        %s257 = sadd.s32 %s252, %s256
        %s258 = smul.u32 2, %s257
      $region20: #{cd_imm_forward.1} parent=15 // pred_fallthru
        _
      // Predicated region
      $region21: #{cd_imm_forward.1} parent=15 // pred_check
        %p259 = pneg %p109
      $region22: #{cd_imm_forward.1} parent=15 // pred_check_branch
        %261 = sbr.rel (%p259) target = $region24
      $region23: #{cd_imm_forward.1} parent=15 // pred_region
        %s262 = sld [smem:[#allocation3 + %s34]]
        %s263 = sld [smem:[#allocation4 + %s34]]
        %s264 = ssub.s32 %s263, 1
        %p265 = scmp.lt.s32.totalorder %s35, %s264
        %s266 = scalar_select %p265, %s35, %s264
        %s267 = sadd.s32 %s262, %s266
        %s268 = smul.u32 2, %s267
        %p269 = scmp.lt.s32.totalorder %s268, 1
        %s270 = scalar_select %p269, %s268, 1
        %s271 = smul.addr %s270, 4
        %s272 = scalar_lea.vmem %s3, %s271
        %s273 = sld [smem:[#allocation3 + %s34]]
        %s274 = sld [smem:[#allocation4 + %s34]]
        %s275 = ssub.s32 %s274, 1
        %p276 = scmp.lt.s32.totalorder %s35, %s275
        %s277 = scalar_select %p276, %s35, %s275
        %s278 = sadd.s32 %s273, %s277
        %s279 = smul.u32 2, %s278
      $region24: #{cd_imm_forward.1} parent=15 // pred_fallthru
        _
      // Predicated region
      $region25: #{cd_imm_forward.1} parent=15 // pred_check
        %p280 = pneg %p135
      $region26: #{cd_imm_forward.1} parent=15 // pred_check_branch
        %282 = sbr.rel (%p280) target = $region28
      $region27: #{cd_imm_forward.1} parent=15 // pred_region
        %p283 = scmp.lt.s32.totalorder %s34, 2
        %s284 = scalar_select %p283, %s34, 2
        %s285 = smul.addr %s284, 8
        %s286 = smul.addr %s285, 4
        %s287 = scalar_lea.vmem %s4, %s286
      $region28: #{cd_imm_forward.1} parent=15 // pred_fallthru
        _
      // Predicated region
      $region29: #{cd_imm_forward.1} parent=15 // pred_check
        %p288 = pneg %p161
      $region30: #{cd_imm_forward.1} parent=15 // pred_check_branch
        %290 = sbr.rel (%p288) target = $region32
      $region31: #{cd_imm_forward.1} parent=15 // pred_region
        %p291 = scmp.lt.s32.totalorder %s34, 2
        %s292 = scalar_select %p291, %s34, 2
        %s293 = scalar_lea.vmem %s5, %s292
      $region32: #{cd_imm_forward.1} parent=15 // pred_fallthru
        _
    $region16: #{cd_imm_forward.1} parent=5 // pred_fallthru
      _
    %p294 = scmp.le.s32.totalorder 1, %s27
    %p295 = scmp.lt.s32.totalorder %s27, 4
    %p296 = pnand %p294, %p295
    %p297 = pneg %p296
    // Predicated region
    $region33: #{cd_imm_forward.1} parent=5 // pred_check
      _
    $region34: #{cd_imm_forward.1} parent=5 // pred_check_branch
      %299 = sbr.rel (%p296) target = $region36
    $region35: #{cd_imm_forward.1} parent=5 // pred_region
      %s300 = ssub.s32 %s27, 1
      %s301 = sld [smem:[#allocation3 + %s36]]
      %s302 = sld [smem:[#allocation4 + %s36]]
      %s303 = ssub.s32 %s302, 1
      %p304 = scmp.lt.s32.totalorder %s37, %s303
      %s305 = scalar_select %p304, %s37, %s303
      %s306 = sadd.s32 %s301, %s305
      %s307 = smul.u32 2, %s306
      %p308 = scmp.lt.s32.totalorder %s307, 1
      %s309 = scalar_select %p308, %s307, 1
      %s310 = smul.addr %s309, 8
      %s311 = scalar_lea.vmem %s2, %s310
      %p312 = pneg %p77
      %p313 = pneg %p74
      %s314 = sld [smem:[#allocation3 + %s36]]
      %s315 = sld [smem:[#allocation4 + %s36]]
      %s316 = ssub.s32 %s315, 1
      %p317 = scmp.lt.s32.totalorder %s37, %s316
      %s318 = scalar_select %p317, %s37, %s316
      %s319 = sadd.s32 %s314, %s318
      %s320 = smul.u32 2, %s319
      %p321 = scmp.lt.s32.totalorder %s320, 1
      %s322 = scalar_select %p321, %s320, 1
      %s323 = smul.addr %s322, 4
      %s324 = scalar_lea.vmem %s3, %s323
      %p325 = pneg %p115
      %p326 = pneg %p112
      %p327 = scmp.lt.s32.totalorder %s36, 2
      %s328 = scalar_select %p327, %s36, 2
      %s329 = smul.addr %s328, 8
      %s330 = smul.addr %s329, 4
      %s331 = scalar_lea.vmem %s4, %s330
      %p332 = pneg %p141
      %p333 = pneg %p138
      %p334 = scmp.lt.s32.totalorder %s36, 2
      %s335 = scalar_select %p334, %s36, 2
      %s336 = scalar_lea.vmem %s5, %s335
      %p337 = pneg %p167
      %p338 = pneg %p164
      %p339 = pneg %p193
      %p340 = pneg %p190
      %p341 = scmp.lt.s32.totalorder %s36, 2
      %s342 = scalar_select %p341, %s36, 2
      %s343 = scalar_lea.vmem %s6, %s342
      %p344 = pneg %p219
      %p345 = pneg %p216
      %p346 = scmp.lt.s32.totalorder %s36, 2
      %s347 = scalar_select %p346, %s36, 2
      %s348 = scalar_lea.vmem %s7, %s347
      %s349 = sld [smem:[#allocation3 + %s36]]
      %s350 = sld [smem:[#allocation4 + %s36]]
      %s351 = ssub.s32 %s350, 1
      %p352 = scmp.lt.s32.totalorder %s37, %s351
      %s353 = scalar_select %p352, %s37, %s351
      %s354 = sadd.s32 %s349, %s353
      %s355 = smul.u32 2, %s354
      %p356 = scmp.lt.s32.totalorder %s355, 1
      %s357 = scalar_select %p356, %s355, 1
      %s358 = smul.addr %s357, 8
      %s359 = scalar_lea.vmem %s2, %s358
      %s360 = sld [smem:[#allocation3 + %s36]]
      %s361 = sld [smem:[#allocation4 + %s36]]
      %s362 = ssub.s32 %s361, 1
      %p363 = scmp.lt.s32.totalorder %s37, %s362
      %s364 = scalar_select %p363, %s37, %s362
      %s365 = sadd.s32 %s360, %s364
      %s366 = smul.u32 2, %s365
      %s367 = sld [smem:[#allocation3 + %s36]]
      %s368 = sld [smem:[#allocation4 + %s36]]
      %s369 = ssub.s32 %s368, 1
      %p370 = scmp.lt.s32.totalorder %s37, %s369
      %s371 = scalar_select %p370, %s37, %s369
      %s372 = sadd.s32 %s367, %s371
      %s373 = smul.u32 2, %s372
      %p374 = scmp.lt.s32.totalorder %s373, 1
      %s375 = scalar_select %p374, %s373, 1
      %s376 = smul.addr %s375, 4
      %s377 = scalar_lea.vmem %s3, %s376
      %s378 = sld [smem:[#allocation3 + %s36]]
      %s379 = sld [smem:[#allocation4 + %s36]]
      %s380 = ssub.s32 %s379, 1
      %p381 = scmp.lt.s32.totalorder %s37, %s380
      %s382 = scalar_select %p381, %s37, %s380
      %s383 = sadd.s32 %s378, %s382
      %s384 = smul.u32 2, %s383
      %p385 = scmp.lt.s32.totalorder %s36, 2
      %s386 = scalar_select %p385, %s36, 2
      %s387 = smul.addr %s386, 8
      %s388 = smul.addr %s387, 4
      %s389 = scalar_lea.vmem %s4, %s388
      %p390 = scmp.lt.s32.totalorder %s36, 2
      %s391 = scalar_select %p390, %s36, 2
      %s392 = scalar_lea.vmem %s5, %s391
      %p393 = scmp.lt.s32.totalorder %s36, 2
      %s394 = scalar_select %p393, %s36, 2
      %s395 = scalar_lea.vmem %s6, %s394
      %p396 = scmp.lt.s32.totalorder %s36, 2
      %s397 = scalar_select %p396, %s36, 2
      %s398 = scalar_lea.vmem %s7, %s397
      %p400 = scmp.eq.s32.totalorder %s37, 0
      // Predicated region
      $region37: #{cd_imm_forward.1} parent=35 // pred_check
        %p401 = pneg %p400
      $region38: #{cd_imm_forward.1} parent=35 // pred_check_branch
        %403 = sbr.rel (%p401) target = $region40
      $region39: #{cd_imm_forward.1} parent=35 // pred_region
        %404 = vst [vmem:[%s395] sm:$0x1] 0.0
        %vm405 = vcmask 0
        %406 = vst.msk [vmem:[%s398] sm:$0x1] %vm405, 0.0
      $region40: #{cd_imm_forward.1} parent=35 // pred_fallthru
        _
      %s407 = sld [smem:[#allocation4 + %s36]]
      %p408 = scmp.lt.s32.totalorder %s37, %s407
      // Predicated region
      $region41: #{cd_imm_forward.1} parent=35 // pred_check
        %p409 = pneg %p408
      $region42: #{cd_imm_forward.1} parent=35 // pred_check_branch
        %411 = sbr.rel (%p409) target = $region44
      $region43: #{cd_imm_forward.1} parent=35 // pred_region
        %v412 = vld [vmem:[%s377] sm:$0xf]
        %v413 = vld [vmem:[%s377 + $0x4] sm:$0xf]
        %v414 = vld [vmem:[%s389] sm:$0xf]
        %v415 = vld [vmem:[%s389 + $0x4] sm:$0xf]
        %v416 = vld [vmem:[%s389 + $0x8] sm:$0xf]
        %v417 = vld [vmem:[%s389 + $0xc] sm:$0xf]
        %v418 = vld [vmem:[%s389 + $0x10] sm:$0xf]
        %v419 = vld [vmem:[%s389 + $0x14] sm:$0xf]
        %v420 = vld [vmem:[%s389 + $0x18] sm:$0xf]
        %v421 = vld [vmem:[%s389 + $0x1c] sm:$0xf]
        %v422 = vld [vmem:[%s392] sm:$0x1]
        %v425 = vunpack.c.l.b16 %v412
        %v426 = vunpack.c.l.b16 %v413
        %v427 = vpack.c.b16 %v426, %v425
        %v436 = vunpack.c.l.b16 %v414
        %v437 = vunpack.c.l.b16 %v415
        %v438 = vunpack.c.l.b16 %v416
        %v439 = vunpack.c.l.b16 %v417
        %v440 = vunpack.c.l.b16 %v418
        %v441 = vunpack.c.l.b16 %v419
        %v442 = vunpack.c.l.b16 %v420
        %v443 = vunpack.c.l.b16 %v421
        %v444 = vpack.c.b16 %v437, %v436
        %v445 = vpack.c.b16 %v439, %v438
        %v446 = vpack.c.b16 %v441, %v440
        %v447 = vpack.c.b16 %v443, %v442
        %vm452 = vcmask 523264
        %v454 = vsel %vm452, %v427, 0
        %456 = vmatpush.bf16.msra.mxu0 0
        %457 = vmatpush.bf16.msra.mxu0 0
        %458 = vmatpush.bf16.msra.mxu0 0
        %459 = vmatpush.bf16.msra.mxu0 0
        %460 = vmatpush.bf16.msra.mxu0 %v447
        %461 = vmatpush.bf16.msra.mxu0 %v446
        %462 = vmatpush.bf16.msra.mxu0 %v445
        %463 = vmatpush.bf16.msra.mxu0 %v444
        %464 = vmatmul.bf16.gmra.mxu0 %v454
        %v465 = vpop.f32.mrf.mxu0
        %v466 = vadd.f32 0.0, %v465
        %v467 = vpop.f32.mrf.mxu0
        %v468 = vadd.f32 0.0, %v467
        %469 = vdwg.mxu0
        %v471 = vperm.slane %v422, 0
        %v473 = vadd.f32 %v471, %v466
        %v474 = vadd.f32 %v471, %v468
        %475 = vmax.xlane.f32.xlu0 %v473
        %v476 = vpop.xlane.xlu0 %475
        %477 = vmax.xlane.f32.xlu0 %v474
        %v478 = vpop.xlane.xlu0 %477
        %v479 = vsub.f32 %v473, %v476
        %v480 = vsub.f32 %v474, %v478
        %v481 = vmul.f32 %v479, 1.442695
        %v482 = vpow.pop %v481
        %v483 = vmul.f32 %v480, 1.442695
        %v484 = vpow.pop %v483
        %485 = vadd.xlane.f32.xlu0 %v482
        %v486 = vpop.xlane.xlu0 %485
        %487 = vadd.xlane.f32.xlu0 %v484
        %v488 = vpop.xlane.xlu0 %487
        %v489 = vrcp.pop %v486
        %v490 = vrcp.pop %v488
        %v491 = vmul.f32 %v482, %v489
        %v492 = vmul.f32 %v484, %v490
        %v493 = vlog2.pop %v486
        %v494 = vmul.f32 %v493, 0.6931472
        %v495 = vlog2.pop %v488
        %v496 = vmul.f32 %v495, 0.6931472
        %v497 = vadd.f32 %v476, %v494
        %v498 = vadd.f32 %v478, %v496
        %v499 = vld [vmem:[%s359] sm:$0xff]
        %v500 = vld [vmem:[%s359 + $0x8] sm:$0xff]
        %v501 = vstv %s36
        %vm502 = vcmp.eq.s32.totalorder %v499, %v501
        %vm503 = vcmp.eq.s32.totalorder %v500, %v501
        %v504 = vsel %vm502, 1, 0
        %v505 = vsel %vm503, 1, 0
        %v506 = vcvt.s32.f32 %v504
        %v507 = vcvt.s32.f32 %v505
        %v508 = vld [vmem:[%s395] sm:$0x1]
        %510 = vset.pattern.permute.xlu0 0
        %511 = vperm.xlu0 %510, %v506
        %v512 = vpop.permute.xlu0 %511
        %515 = vset.pattern.permute.xlu0 0
        %516 = vperm.xlu0 %515, %v507
        %v517 = vpop.permute.xlu0 %516
        %v519 = vmul.f32 %v512, %v491
        %v520 = vmul.f32 %v517, %v492
        %v521 = vadd.f32 %v519, %v520
        %v522 = vrot.slane %v521, 4
        %v523 = vadd.f32 %v521, %v522
        %v524 = vrot.slane %v523, 2
        %v525 = vadd.f32 %v523, %v524
        %v526 = vrot.slane %v525, 1
        %v527 = vadd.f32 %v525, %v526
        %v528 = vadd.f32 %v508, %v527
        %529 = vst [vmem:[%s395] sm:$0x1] %v528
        %v530 = vld [vmem:[%s398] sm:$0x1]
        %v531 = vmul.f32 %v506, %v497
        %v532 = vmul.f32 %v507, %v498
        %vm533 = vcmask 7168
        %v534 = vsel %vm533, %v531, 0.0
        %v535 = vsel %vm533, %v532, 0.0
        %v536 = vadd.f32 %v534, %v535
        %537 = vadd.xlane.f32.xlu0 %v536
        %v538 = vpop.xlane.xlu0 %537
        %v539 = vrot.slane %v538, 4
        %v540 = vadd.f32 %v538, %v539
        %v541 = vrot.slane %v540, 2
        %v542 = vadd.f32 %v540, %v541
        %v543 = vrot.slane %v542, 1
        %v544 = vadd.f32 %v542, %v543
        %s545 = vtos %v544
        %v546 = vstv %s545
        %v547 = vadd.f32 %v530, %v546
        %vm548 = vcmask 0
        %549 = vst.msk [vmem:[%s398] sm:$0x1] %vm548, %v547
      $region44: #{cd_imm_forward.1} parent=35 // pred_fallthru
        _
      %p550 = scmp.lt.s32.totalorder %s36, 2
      %s551 = scalar_select %p550, %s36, 2
      %s552 = scalar_lea.vmem %s6, %s551
      %p553 = scmp.lt.s32.totalorder %s36, 2
      %s554 = scalar_select %p553, %s36, 2
      %s555 = scalar_lea.vmem %s7, %s554
      // Predicated region
      $region45: #{cd_imm_forward.1} parent=35 // pred_check
        %p556 = pneg %p190
      $region46: #{cd_imm_forward.1} parent=35 // pred_check_branch
        %558 = sbr.rel (%p556) target = $region48
      $region47: #{cd_imm_forward.1} parent=35 // pred_region
        _
      $region48: #{cd_imm_forward.1} parent=35 // pred_fallthru
        _
      // Predicated region
      $region49: #{cd_imm_forward.1} parent=35 // pred_check
        %p559 = pneg %p216
      $region50: #{cd_imm_forward.1} parent=35 // pred_check_branch
        %561 = sbr.rel (%p559) target = $region52
      $region51: #{cd_imm_forward.1} parent=35 // pred_region
        _
      $region52: #{cd_imm_forward.1} parent=35 // pred_fallthru
        _
    $region36: #{cd_imm_forward.1} parent=5 // pred_fallthru
      _
    %p562 = scmp.le.s32.totalorder 2, %s27
    // Predicated region
    $region53: #{cd_imm_forward.1} parent=5 // pred_check
      %p563 = pneg %p562
    $region54: #{cd_imm_forward.1} parent=5 // pred_check_branch
      %565 = sbr.rel (%p563) target = $region56
    $region55: #{cd_imm_forward.1} parent=5 // pred_region
      %s566 = ssub.s32 %s27, 2
      // Predicated region
      $region57: #{cd_imm_forward.1} parent=55 // pred_check
        %p567 = pneg %p196
      $region58: #{cd_imm_forward.1} parent=55 // pred_check_branch
        %569 = sbr.rel (%p567) target = $region60
      $region59: #{cd_imm_forward.1} parent=55 // pred_region
        %p570 = scmp.lt.s32.totalorder %s38, 2
        %s571 = scalar_select %p570, %s38, 2
        %s572 = scalar_lea.vmem %s6, %s571
      $region60: #{cd_imm_forward.1} parent=55 // pred_fallthru
        _
      // Predicated region
      $region61: #{cd_imm_forward.1} parent=55 // pred_check
        %p573 = pneg %p222
      $region62: #{cd_imm_forward.1} parent=55 // pred_check_branch
        %575 = sbr.rel (%p573) target = $region64
      $region63: #{cd_imm_forward.1} parent=55 // pred_region
        %p576 = scmp.lt.s32.totalorder %s38, 2
        %s577 = scalar_select %p576, %s38, 2
        %s578 = scalar_lea.vmem %s7, %s577
      $region64: #{cd_imm_forward.1} parent=55 // pred_fallthru
        _
    $region56: #{cd_imm_forward.1} parent=5 // pred_fallthru
      _
  $region6: #{cd_imm_forward.1} parent=0 // loop_footer
    %s31 = sadd.s32 1, %s27
  $region7: #{cd_imm_forward.1} parent=0 // loop_footer_branch
    %26 = sbr.rel target = $region3
  $region8: #{cd_imm_forward.1} parent=0 // loop_exit
    _

</llo_original>
